<compile_context>
chip_gen: v7x
topology: tpu7x:2x2x1
jax: 0.10.0
libtpu: 0.0.40
codegen_flags: <defaults>
</compile_context>

<pallas_src>
import functools

import jax
import jax.numpy as jnp
from jax.experimental import pallas as pl
from jax.experimental.pallas import tpu as pltpu

_LANE = 128
_MIB = 1024 * 1024


def _round_up(x, m):
    return ((x + m - 1) // m) * m


def _tpu_vmem_bytes():
    try:
        return int(pltpu.get_tpu_info().vmem_capacity_bytes)
    except Exception:
        return 64 * _MIB  # conservative (v7x-sized) default


def embed_matmul_kernel(x_ref, w_ref, out_ref):
    # x_ref: (TB, F); w_ref: (F, TFD) block-diagonal expansion of coefficients;
    # out_ref: (TB, TFD).  relu(x @ W) == relu(x[..., None] * coef).reshape(..)
    acc = jnp.dot(x_ref[...], w_ref[...], preferred_element_type=jnp.float32)
    out_ref[...] = jnp.maximum(acc, 0.0).astype(out_ref.dtype)


def embed_repeat_kernel(x_ref, coef_ref, out_ref, *, num_dims):
    # Fallback path for giant F (expansion matrix too large to materialize).
    x = x_ref[...]                              # (TB, F)
    c = coef_ref[...]                           # (1, F*D)
    x_rep = jnp.repeat(x, num_dims, axis=1)     # (TB, F*D)
    out_ref[...] = jnp.maximum(x_rep * c, 0.0).astype(out_ref.dtype)


def simple_embedding_forward(x, coefficients, *, force_pallas=False):
    """x: (B, F), coefficients: (F, D) -> (B, F*D), relu(x[...,None]*coef).reshape."""
    B, F = x.shape
    F2, D = coefficients.shape
    assert F == F2, "num_features mismatch"
    FD = F * D
    dtype = x.dtype
    itemsize = jnp.dtype(dtype).itemsize
    sub = max(8, 32 // max(1, itemsize))  # sublane packing: 8 f32 / 16 bf16 / 32 int8

    # Small-problem bypass: kernel launch/pipeline overhead dwarfs the work.
    if (B * FD) < (1 << 14) and not force_pallas:
        return jnp.maximum(x[..., None] * coefficients[None], 0.0).reshape(B, FD)

    vmem_phys = _tpu_vmem_bytes()
    small_vmem = vmem_phys <= 64 * _MIB                       # v7x-class budget
    target_block_bytes = (8 * _MIB) if small_vmem else (16 * _MIB)
    vmem_cap = (32 * _MIB) if small_vmem else (64 * _MIB)

    FD_pad = _round_up(FD, _LANE)

    # ---------- Preferred path: relu(x @ W) on the otherwise-idle MXU ----------
    w_hbm_bytes = F * FD_pad * itemsize
    if w_hbm_bytes <= 256 * _MIB:
        # W[f, g*D + d] = (f == g) * coefficients[g, d]; lane axis padded to 128.
        eye = jnp.eye(F, dtype=dtype)
        w = (eye[:, :, None] * coefficients[None, :, :].astype(dtype)).reshape(F, FD)
        if FD_pad != FD:
            w = jnp.pad(w, ((0, 0), (0, FD_pad - FD)))

        # FD (lane) tile: multiple of 128, capped so the double-buffered (F, tfd)
        # W tile uses at most ~half an output-block budget of VMEM.
        w_budget = target_block_bytes // 2
        tfd = FD_pad
        if tfd * itemsize * sub > target_block_bytes:
            tfd = max(_LANE, (target_block_bytes // (sub * itemsize)) // _LANE * _LANE)
        tfd_w_cap = max(_LANE, (w_budget // max(1, F * itemsize)) // _LANE * _LANE)
        tfd = min(tfd, tfd_w_cap, FD_pad)

        # Batch (sublane) tile: sized purely by bytes (no arbitrary row cap).
        tb = min(B, max(sub, target_block_bytes // max(1, tfd * itemsize)))
        if tb < B:
            tb = max(sub, (tb // sub) * sub)
        # v7x: ensure >= 2 batch blocks so the "parallel" axis spans both TCs.
        if small_vmem and B >= 2 * sub and pl.cdiv(B, tb) < 2:
            tb = max(sub, ((B // 2) // sub) * sub)

        out_tile = tb * tfd * itemsize
        x_tile = tb * F * itemsize
        w_tile = F * tfd * itemsize
        vmem_limit = int(min(max(2 * (out_tile + x_tile + w_tile) + 4 * _MIB,
                                 16 * _MIB), vmem_cap))

        grid = (pl.cdiv(B, tb), pl.cdiv(FD_pad, tfd))
        out_padded = pl.pallas_call(
            embed_matmul_kernel,
            out_shape=jax.ShapeDtypeStruct((B, FD_pad), dtype),
            grid=grid,
            in_specs=[
                pl.BlockSpec((tb, F), lambda i, j: (i, 0)),    # batch tile of x
                pl.BlockSpec((F, tfd), lambda i, j: (0, j)),   # W lane tile
            ],
            out_specs=pl.BlockSpec((tb, tfd), lambda i, j: (i, j)),
            compiler_params=pltpu.CompilerParams(
                dimension_semantics=("parallel", "arbitrary"),
                vmem_limit_bytes=vmem_limit,
            ),
        )(x, w)
        return out_padded if FD_pad == FD else out_padded[:, :FD]

    # ---------- Fallback: giant F, keep the repeat kernel (batch-tiled) ----------
    # TODO(synk): add an FD grid axis (tile multiple of lcm(128, D)) for this
    # giant-F fallback so its out tile also stays within target_block_bytes.
    coef_flat = coefficients.reshape(1, FD).astype(dtype)
    tb = min(B, max(sub, target_block_bytes // max(1, FD * itemsize)))
    if tb < B:
        tb = max(sub, (tb // sub) * sub)
    if small_vmem and B >= 2 * sub and pl.cdiv(B, tb) < 2:
        tb = max(sub, ((B // 2) // sub) * sub)

    out_tile = tb * FD * itemsize
    vmem_limit = int(min(max(2 * (out_tile + tb * F * itemsize) + FD * itemsize + 4 * _MIB,
                             16 * _MIB), vmem_cap))
    return pl.pallas_call(
        functools.partial(embed_repeat_kernel, num_dims=D),
        out_shape=jax.ShapeDtypeStruct((B, FD), dtype),
        grid=(pl.cdiv(B, tb),),
        in_specs=[
            pl.BlockSpec((tb, F), lambda i: (i, 0)),
            pl.BlockSpec((1, FD), lambda i: (0, 0)),
        ],
        out_specs=pl.BlockSpec((tb, FD), lambda i: (i, 0)),
        compiler_params=pltpu.CompilerParams(
            dimension_semantics=("parallel",),
            vmem_limit_bytes=vmem_limit,
        ),
    )(x, coef_flat)


if __name__ == "__main__":
    # Small synthetic sizes consistent with the module's forward (x: (B, F)).
    batch = 8
    num_features = 4
    num_dimensions = 32
    variance = 1.0  # torch.normal(0.0, variance, ...) uses this as the std

    key = jax.random.PRNGKey(0)
    k_coef, k_x = jax.random.split(key)

    coefficients = variance * jax.random.normal(
        k_coef, (num_features, num_dimensions), dtype=jnp.float32
    )
    x = jax.random.normal(k_x, (batch, num_features), dtype=jnp.float32)

    # force_pallas=True so the demo exercises the kernel path at toy size
    # (production callers at this size would take the plain-JAX bypass).
    out = simple_embedding_forward(x, coefficients, force_pallas=True)
    out = jax.block_until_ready(out)

    # Reference check in plain JAX (same math as the torch forward).
    ref = jnp.maximum(x[..., None] * coefficients[None], 0.0).reshape(batch, -1)
    assert out.shape == (batch, num_features * num_dimensions)
    assert jnp.allclose(out, ref, atol=1e-6, rtol=1e-6)

    print("KERNEL_OK")
</pallas_src>

<mosaic_0001>
module attributes {stable_mosaic.version = 11 : i64} {
  func.func @embed_matmul_kernel(%arg0: i32, %arg1: i32, %arg2: memref<8x4xf32, #tpu.memory_space<vmem>>, %arg3: memref<4x128xf32, #tpu.memory_space<vmem>>, %arg4: memref<8x128xf32, #tpu.memory_space<vmem>>) attributes {dimension_semantics = [#tpu.dimension_semantics<parallel>, #tpu.dimension_semantics<arbitrary>], iteration_bounds = array<i64: 1, 1>, scalar_prefetch = 0 : i64, scratch_operands = 0 : i64, tpu.core_type = #tpu.core_type<tc>, window_params = [{transform_indices = @transform_0, window_bounds = array<i64: 8, 4>}, {transform_indices = @transform_1, window_bounds = array<i64: 4, 128>}, {transform_indices = @transform_2, window_bounds = array<i64: 8, 128>}]} {
    %c0 = arith.constant 0 : index
    %c0_0 = arith.constant 0 : index
    %0 = vector.load %arg2[%c0, %c0_0] : memref<8x4xf32, #tpu.memory_space<vmem>>, vector<8x4xf32>
    %c0_1 = arith.constant 0 : index
    %c0_2 = arith.constant 0 : index
    %1 = vector.load %arg3[%c0_1, %c0_2] : memref<4x128xf32, #tpu.memory_space<vmem>>, vector<4x128xf32>
    %cst = arith.constant dense<0.000000e+00> : vector<8x128xf32>
    %2 = tpu.matmul %0, %1, %cst {dimension_numbers = #tpu.dot_dimension_numbers<[1], [0], [0], [1], [0, 0, 1, 1], [], []>} : vector<8x4xf32>, vector<4x128xf32>, vector<8x128xf32> -> vector<8x128xf32>
    %cst_3 = arith.constant 0.000000e+00 : f32
    %3 = vector.broadcast %cst_3 : f32 to vector<8x128xf32>
    %4 = arith.maximumf %2, %3 : vector<8x128xf32>
    %c0_4 = arith.constant 0 : index
    %c0_5 = arith.constant 0 : index
    %5 = vector.load %arg4[%c0_4, %c0_5] : memref<8x128xf32, #tpu.memory_space<vmem>>, vector<8x128xf32>
    tpu.vector_store %arg4[%c0_4, %c0_5], %4 {strides = array<i32>} : memref<8x128xf32, #tpu.memory_space<vmem>>, vector<8x128xf32>,
    return
  }
  func.func @transform_0(%arg0: i32, %arg1: i32) -> (i32, i32) {
    %c0_i32 = arith.constant 0 : i32
    %c0_i32_0 = arith.constant 0 : i32
    return %arg0, %c0_i32 : i32, i32
  }
  func.func @transform_1(%arg0: i32, %arg1: i32) -> (i32, i32) {
    %c0_i32 = arith.constant 0 : i32
    %c0_i32_0 = arith.constant 0 : i32
    return %c0_i32, %arg1 : i32, i32
  }
  func.func @transform_2(%arg0: i32, %arg1: i32) -> (i32, i32) {
    %c0_i32 = arith.constant 0 : i32
    return %arg0, %arg1 : i32, i32
  }
}

</mosaic_0001>

<llo_original>
// kernel: tpu_custom_call.1
$region0: #{tpu_custom_call.1}
  #allocation0 [shape = 'u32[]', space=smem, size = 0x4, offset = 0x4, fixed_abs, tag = 'smem constant byte address 0x4 - core index']
  #allocation1 [shape = 'u32[144,128]{1,0:T(1,128)}', space=vmem, size = 0x12000, scoped, tag = 'internal scratch']
  %s0 = inlined_call_operand.vmem [shape: f32[8,4], index: 0, kind: input, shape index: {}]
  %s1 = inlined_call_operand.vmem [shape: f32[4,128], index: 1, kind: input, shape index: {}]
  %s2 = inlined_call_operand.hbm [shape: f32[8,128], index: 2, kind: output, shape index: {}]
  %s3 = sld [smem:[#allocation0]]
  $region18: #{tpu_custom_call.1} parent=0
    _
  %s5 = ssub.s32 1, %s3
  %s6 = scalar_select 0, %s5, %s3
  $region1: #{tpu_custom_call.1} parent=0
    #allocation2 [shape = 'u8[4096]{0}', space=vmem, size = 0x1000, scoped, tag = 'output window, operand 0, single buffered']
    #allocation3 [shape = 's32[1]{0}', space=sflag, size = 0x4, scoped, tag = 'scoped memory for tpu_custom_call.1']
    %7 = vsyncpa [#allocation3], 0
    // Predicated region
    $region2: #{tpu_custom_call.1} parent=1 // pred_check
      _
    $region3: #{tpu_custom_call.1} parent=1 // pred_check_branch
      %9 = sbr.rel (0) target = $region5
    $region4: #{tpu_custom_call.1} parent=1 // pred_region
      _
    $region5: #{tpu_custom_call.1} parent=1 // pred_fallthru
      _
    // Predicated region
    $region6: #{tpu_custom_call.1} parent=1 // pred_check
      _
    $region7: #{tpu_custom_call.1} parent=1 // pred_check_branch
      %11 = sbr.rel (0) target = $region9
    $region8: #{tpu_custom_call.1} parent=1 // pred_region
      _
    $region9: #{tpu_custom_call.1} parent=1 // pred_fallthru
      _
    %v12 = vld [vmem:[%s0] sm:$0xff]
    %v13 = vld [vmem:[%s1] sm:$0xf]
    %vm14 = vcmask 31744
    %v16 = vsel %vm14, %v12, 0
    %vm18 = vcmask 1043456
    %v20 = vsel %vm18, %v13, 0
    %22 = vmatprep.subr.mxu0 0.0
    %23 = vmatpush1.msra.mxu0 %v20
    %24 = vmatprep.subr.mxu0 0.0
    %25 = vmatpush1.msra.mxu0 0.0
    %26 = vmatprep.subr.mxu0 0.0
    %27 = vmatpush1.msra.mxu0 0.0
    %28 = vmatprep.subr.mxu0 0.0
    %29 = vmatpush1.msra.mxu0 0.0
    %30 = vmatprep.subr.mxu0 0.0
    %31 = vmatpush1.msra.mxu0 0.0
    %32 = vmatprep.subr.mxu0 0.0
    %33 = vmatpush1.msra.mxu0 0.0
    %34 = vmatprep.subr.mxu0 0.0
    %35 = vmatpush1.msra.mxu0 0.0
    %36 = vmatprep.subr.mxu0 0.0
    %37 = vmatpush1.msra.mxu0 0.0
    %38 = vmatprep.subr.mxu0 0.0
    %39 = vmatpush1.msra.mxu0 0.0
    %40 = vmatprep.subr.mxu0 0.0
    %41 = vmatpush1.msra.mxu0 0.0
    %42 = vmatprep.subr.mxu0 0.0
    %43 = vmatpush1.msra.mxu0 0.0
    %44 = vmatprep.subr.mxu0 0.0
    %45 = vmatpush1.msra.mxu0 0.0
    %46 = vmatprep.subr.mxu0 0.0
    %47 = vmatpush1.msra.mxu0 0.0
    %48 = vmatprep.subr.mxu0 0.0
    %49 = vmatpush1.msra.mxu0 0.0
    %50 = vmatprep.subr.mxu0 0.0
    %51 = vmatpush1.msra.mxu0 0.0
    %52 = vmatprep.subr.mxu0 0.0
    %53 = vmatpush1.msra.mxu0 0.0
    %54 = vmatprep.subr.mxu0 0.0
    %55 = vmatpush1.msra.mxu0 0.0
    %56 = vmatprep.subr.mxu0 0.0
    %57 = vmatpush1.msra.mxu0 0.0
    %58 = vmatprep.subr.mxu0 0.0
    %59 = vmatpush1.msra.mxu0 0.0
    %60 = vmatprep.subr.mxu0 0.0
    %61 = vmatpush1.msra.mxu0 0.0
    %62 = vmatprep.subr.mxu0 0.0
    %63 = vmatpush1.msra.mxu0 0.0
    %64 = vmatprep.subr.mxu0 0.0
    %65 = vmatpush1.msra.mxu0 0.0
    %66 = vmatprep.subr.mxu0 0.0
    %67 = vmatpush1.msra.mxu0 0.0
    %68 = vmatprep.subr.mxu0 0.0
    %69 = vmatpush1.msra.mxu0 0.0
    %70 = vmatprep.subr.mxu0 0.0
    %71 = vmatpush1.msra.mxu0 0.0
    %72 = vmatprep.subr.mxu0 0.0
    %73 = vmatpush1.msra.mxu0 0.0
    %74 = vmatprep.subr.mxu0 0.0
    %75 = vmatpush1.msra.mxu0 0.0
    %76 = vmatprep.subr.mxu0 0.0
    %77 = vmatpush1.msra.mxu0 0.0
    %78 = vmatprep.subr.mxu0 0.0
    %79 = vmatpush1.msra.mxu0 0.0
    %80 = vmatprep.subr.mxu0 0.0
    %81 = vmatpush1.msra.mxu0 0.0
    %82 = vmatprep.subr.mxu0 0.0
    %83 = vmatpush1.msra.mxu0 0.0
    %84 = vmatprep.subr.mxu0 0.0
    %85 = vmatpush1.msra.mxu0 0.0
    %86 = vmatprep.mubr.f32.mxu0 0.0
    %87 = vmatmul.mubr.f32.gmra.mrb[0].mxu0 %v16
    %v88 = vpop.f32.mrb[0].mxu0
    %v89 = vadd.f32 0.0, %v88
    %v90 = vpop.f32.mrb[0].mxu0
    %91 = vdwg.mxu0
    %v92 = vmax.f32 %v89, 0.0
    %93 = vst [vmem:[#allocation2] sm:$0xff] %v92
    // Predicated region
    $region10: #{tpu_custom_call.1} parent=1 // pred_check
      _
    $region11: #{tpu_custom_call.1} parent=1 // pred_check_branch
      %95 = sbr.rel (0) target = $region13
    $region12: #{tpu_custom_call.1} parent=1 // pred_region
      %s97 = ssub.s32 128, 128
      %98 = vsyncadd [#allocation3], %s97
      %s100 = sshll.u32 [#allocation2], 4
      %s101 = int_to_ptr.vmem [resolvable:$true] %s100
      %103 = dma.vmem_to_hbm [thread:$0]  %s101, 128, %s2, [#allocation3]
    $region13: #{tpu_custom_call.1} parent=1 // pred_fallthru
      _
    // Predicated region
    $region14: #{tpu_custom_call.1} parent=1 // pred_check
      _
    $region15: #{tpu_custom_call.1} parent=1 // pred_check_branch
      %105 = sbr.rel (0) target = $region17
    $region16: #{tpu_custom_call.1} parent=1 // pred_region
      %106 = dma.done [#allocation3], 128
    $region17: #{tpu_custom_call.1} parent=1 // pred_fallthru
      _
    %107 = vsyncpa [#allocation3], 1

</llo_original>
